<compile_context>
chip_gen: v5e
topology: v5e:2x2
jax: 0.10.0
libtpu: 0.0.40
codegen_flags: <defaults>
</compile_context>

<pallas_src>
import jax
import jax.numpy as jnp
from jax.experimental import pallas as pl
from jax.experimental.pallas import tpu as pltpu

_LANE = 1024                 # canonical lane-dense width (multiple of 128)
_SMALL_N = 1 << 17           # below this, a fused XLA elementwise op wins
_MAX_RAGGED_COLS = 64 * 1024 # widest un-tiled trailing dim we accept raggedly


def _cast_clamp_kernel(x_ref, o_ref):
    # int -> f32 promotion (PyTorch mixed int/float clamp), then lower-bound
    # clamp only (max=None). One VALU cast + one VALU max per vreg; the op is
    # purely HBM-bandwidth bound, so all wins are in layout/tiling.
    o_ref[...] = jnp.maximum(x_ref[...].astype(jnp.float32), jnp.float32(-10.0))


def _round_up(a: int, b: int) -> int:
    return ((a + b - 1) // b) * b


def _max_block_rows() -> int:
    """Per-generation cap on rows per block (at 1024 lanes of f32)."""
    max_rows = 512  # 2 MiB/buffer: safe inside every generation's scoped VMEM
    try:
        info = pltpu.get_tpu_info()
        vmem = getattr(info, "vmem_capacity_bytes", None)
        # v7x: 64 MiB VMEM/TC but ~3.2 TB/s HBM -> per-step overhead is the
        # bigger cost; 1024-row blocks (int32 in + f32 out, double-buffered
        # ~16 MiB live) still fit its 32 MiB scoped default and amortize it.
        if vmem is not None and vmem <= (64 << 20):
            max_rows = 1024
    except Exception:
        pass
    return max_rows


def _pick_block_rows(rows: int, cols: int, max_rows: int) -> int:
    # VMEM budget: keep one block at <= max_rows * _LANE elements.
    budget = max(8, ((max_rows * _LANE) // max(cols, 1)) // 8 * 8)
    # Aim for >= ~8 grid steps (pipelined streaming; >= 2 so both v7x
    # TensorCores get work), but never below 64 rows so the fixed ~0.35 us
    # per-step overhead stays amortized.
    split = max(64, _round_up(pl.cdiv(rows, 8), 8))
    block_rows = min(budget, split, max_rows)
    block_rows = max(8, (block_rows // 8) * 8)   # multiple of 8 (sublane tile)
    if block_rows >= rows:
        block_rows = rows                        # single full-extent block
    return block_rows


def _pallas_cast_clamp_2d(x2d: jax.Array) -> jax.Array:
    rows, cols = x2d.shape
    block_rows = _pick_block_rows(rows, cols, _max_block_rows())
    grid = (pl.cdiv(rows, block_rows),)          # last block may be partial
    return pl.pallas_call(
        _cast_clamp_kernel,
        out_shape=jax.ShapeDtypeStruct((rows, cols), jnp.float32),
        grid=grid,
        in_specs=[pl.BlockSpec((block_rows, cols), lambda i: (i, 0))],
        out_specs=pl.BlockSpec((block_rows, cols), lambda i: (i, 0)),
        compiler_params=pltpu.CompilerParams(
            dimension_semantics=("parallel",)),
    )(x2d)


def cast_clamp_int_input_float_min(x: jax.Array, *, force_pallas: bool = False) -> jax.Array:
    """torch.clamp(x, -10.0, None) for integer x -> float32, same shape."""
    orig_shape = x.shape
    n = int(x.size)

    # Tiny inputs: a fused XLA elementwise op beats any custom-call launch.
    if n == 0 or (not force_pallas and n < _SMALL_N):
        return jnp.maximum(x.astype(jnp.float32), jnp.float32(-10.0))

    if n % _LANE == 0:
        # Free repack (pure reshape of a contiguous array) to a lane-dense
        # slab: unmasked full-lane stores.
        x2d = x.reshape(-1, _LANE)
    elif x.ndim >= 2 and orig_shape[-1] <= _MAX_RAGGED_COLS:
        # Ragged trailing dim: block spans the full last dim (allowed since it
        # equals the array dim); edge stores are lane-masked but no extra HBM
        # passes are introduced.
        x2d = x.reshape(-1, orig_shape[-1])
    elif x.ndim <= 1 and n <= _MAX_RAGGED_COLS:
        x2d = x.reshape(1, -1)
    else:
        # Pathological ragged trailing dim too wide for a single-row-block in
        # VMEM: last-resort repack with pad + trailing slice (extra copies).
        pad = _round_up(n, _LANE) - n
        flat = jnp.pad(x.reshape(-1), (0, pad))
        out = _pallas_cast_clamp_2d(flat.reshape(-1, _LANE))
        return out.reshape(-1)[:n].reshape(orig_shape)

    return _pallas_cast_clamp_2d(x2d).reshape(orig_shape)


if __name__ == "__main__":
    key = jax.random.PRNGKey(0)
    k1, k2, k3, k4 = jax.random.split(key, 4)

    def ref(x):
        return jnp.maximum(x.astype(jnp.float32), jnp.float32(-10.0))

    cases = {
        # Module's example input: randint(-20, 20, (5, 3)). TPU JAX defaults
        # to int32 (no int64); semantics identical in this range.
        "small_5x3": jax.random.randint(k1, (5, 3), -20, 20, dtype=jnp.int32),
        # Ragged trailing dim -> full-width blocks + partial edge row block.
        "ragged_300x513": jax.random.randint(k2, (300, 513), -20, 20, dtype=jnp.int32),
        # Total divisible by 1024 -> free lane-dense repack, multi-block grid.
        "aligned_64x2048": jax.random.randint(k3, (64, 2048), -20, 20, dtype=jnp.int32),
        # 1-D input.
        "vec_1000": jax.random.randint(k4, (1000,), -20, 20, dtype=jnp.int32),
    }

    for name, x in cases.items():
        out = jax.block_until_ready(
            cast_clamp_int_input_float_min(x, force_pallas=True))
        r = ref(x)
        assert out.dtype == jnp.float32, name
        assert out.shape == x.shape, name
        assert bool(jnp.all(out == r)), name

    print("KERNEL_OK")
</pallas_src>

<mosaic_0001>
module attributes {stable_mosaic.version = 11 : i64} {
  func.func @_cast_clamp_kernel(%arg0: i32, %arg1: memref<5x3xi32, #tpu.memory_space<vmem>>, %arg2: memref<5x3xf32, #tpu.memory_space<vmem>>) attributes {dimension_semantics = [#tpu.dimension_semantics<parallel>], iteration_bounds = array<i64: 1>, scalar_prefetch = 0 : i64, scratch_operands = 0 : i64, tpu.core_type = #tpu.core_type<tc>, window_params = [{transform_indices = @transform_0, window_bounds = array<i64: 5, 3>}, {transform_indices = @transform_1, window_bounds = array<i64: 5, 3>}]} {
    %c0 = arith.constant 0 : index
    %c0_0 = arith.constant 0 : index
    %0 = vector.load %arg1[%c0, %c0_0] : memref<5x3xi32, #tpu.memory_space<vmem>>, vector<5x3xi32>
    %1 = arith.sitofp %0 : vector<5x3xi32> to vector<5x3xf32>
    %cst = arith.constant -1.000000e+01 : f32
    %2 = vector.broadcast %cst : f32 to vector<5x3xf32>
    %3 = arith.maximumf %1, %2 : vector<5x3xf32>
    %c0_1 = arith.constant 0 : index
    %c0_2 = arith.constant 0 : index
    %4 = vector.load %arg2[%c0_1, %c0_2] : memref<5x3xf32, #tpu.memory_space<vmem>>, vector<5x3xf32>
    tpu.vector_store %arg2[%c0_1, %c0_2], %3 {strides = array<i32>} : memref<5x3xf32, #tpu.memory_space<vmem>>, vector<5x3xf32>,
    return
  }
  func.func @transform_0(%arg0: i32) -> (i32, i32) {
    %c0_i32 = arith.constant 0 : i32
    %c0_i32_0 = arith.constant 0 : i32
    return %arg0, %c0_i32 : i32, i32
  }
  func.func @transform_1(%arg0: i32) -> (i32, i32) {
    %c0_i32 = arith.constant 0 : i32
    %c0_i32_0 = arith.constant 0 : i32
    return %arg0, %c0_i32 : i32, i32
  }
}

</mosaic_0001>

<llo_original>
// kernel: tpu_custom_call.1
$region0: #{tpu_custom_call.1}
  #allocation0 [shape = 'u32[]', space=smem, size = 0x4, offset = 0x4, fixed_abs, tag = 'smem constant byte address 0x4 - core index']
  #allocation1 [shape = 'u32[72,128]{1,0:T(1,128)}', space=vmem, size = 0x9000, scoped, tag = 'internal scratch']
  %s0 = inlined_call_operand.vmem [shape: s32[5,3], index: 0, kind: input, shape index: {}]
  %s1 = inlined_call_operand.vmem [shape: f32[5,3], index: 1, kind: output, shape index: {}]
  %s2 = sld [smem:[#allocation0]]
  $region14: #{tpu_custom_call.1} parent=0
    _
  %s4 = ssub.s32 1, %s2
  %s5 = scalar_select 0, %s4, %s2
  // Predicated region
  $region2: #{tpu_custom_call.1} parent=0 // pred_check
    _
  $region3: #{tpu_custom_call.1} parent=0 // pred_check_branch
    %7 = sbr.rel (0) target = $region5
  $region4: #{tpu_custom_call.1} parent=0 // pred_region
    _
  $region5: #{tpu_custom_call.1} parent=0 // pred_fallthru
    _
  %v8 = vld [vmem:[%s0] sm:$0x1f]
  %v9 = vcvt.s32.f32 %v8
  %v10 = vmax.f32 %v9, -10.0
  %vm11 = vcmask 20480
  %12 = vst.msk [vmem:[%s1] sm:$0x1f] %vm11, %v10
  // Predicated region
  $region6: #{tpu_custom_call.1} parent=0 // pred_check
    _
  $region7: #{tpu_custom_call.1} parent=0 // pred_check_branch
    %14 = sbr.rel (0) target = $region9
  $region8: #{tpu_custom_call.1} parent=0 // pred_region
    _
  $region9: #{tpu_custom_call.1} parent=0 // pred_fallthru
    _
  // Predicated region
  $region10: #{tpu_custom_call.1} parent=0 // pred_check
    _
  $region11: #{tpu_custom_call.1} parent=0 // pred_check_branch
    %16 = sbr.rel (0) target = $region13
  $region12: #{tpu_custom_call.1} parent=0 // pred_region
    _
  $region13: #{tpu_custom_call.1} parent=0 // pred_fallthru
    _

</llo_original>
